<compile_context>
chip_gen: v7x
topology: tpu7x:2x2x1
jax: 0.10.0
libtpu: 0.0.40
codegen_flags: <defaults>
</compile_context>

<pallas_src>
import jax
import jax.numpy as jnp
import numpy as np
from jax.experimental import pallas as pl
from jax.experimental.pallas import tpu as pltpu


_LANE_CHUNK = 256   # in-kernel lane (batch) chunk: (64,256)+(32,256) f32 = 24 vregs
_K_PAD = 8          # layer-1 contraction padded 3 -> 8 (sublane-aligned for the MXU)


def _sigmoid(z):
    # sigmoid(z) == 0.5 * tanh(0.5 * z) + 0.5 : one EUP op instead of exp + divide.
    return 0.5 * jnp.tanh(0.5 * z) + 0.5


def _mlp_kernel(xT_ref, w1_ref, b1_ref, w2_ref, b2_ref, w3_ref, b3_ref, o_ref):
    """Fused 3-layer MLP, transposed layout: batch lives on the lane axis.

    xT_ref: (8, TB)   (x^T, K zero-padded 3 -> 8)
    w1_ref: (64, 8)   b1_ref: (64, 1)
    w2_ref: (32, 64)  b2_ref: (32, 1)
    w3_ref: (32, 1)   b3_ref: (1, 1)
    o_ref : (1, TB)   (lane-dense output)
    """
    tb = xT_ref.shape[1]
    chunk = min(_LANE_CHUNK, tb)
    n_chunks = tb // chunk          # TB is a multiple of chunk by construction

    # Weights/biases are tiny (< 3 vregs total); hoist the loads out of the loop.
    w1 = w1_ref[...]
    b1 = b1_ref[...]
    w2 = w2_ref[...]
    b2 = b2_ref[...]
    w3 = w3_ref[...]
    b3 = b3_ref[...]

    @pl.loop(0, n_chunks)
    def _(c):
        start = pl.multiple_of(c * chunk, 128)
        xc = xT_ref[:, pl.ds(start, chunk)]                               # (8, chunk)

        # Layer 1 on the (otherwise idle) MXU; padded K rows are zeros.
        h1 = _sigmoid(jnp.dot(w1, xc, preferred_element_type=jnp.float32) + b1)

        # Layer 2: 32x64 MXU matmul, batch stays lane-dense.
        h2 = _sigmoid(jnp.dot(w2, h1, preferred_element_type=jnp.float32) + b2)

        # Layer 3: out_features == 1 -> sublane reduce (XLU), not a 1-row MXU pass.
        h3 = jnp.sum(h2 * w3, axis=0, keepdims=True) + b3                 # (1, chunk)
        o_ref[:, pl.ds(start, chunk)] = _sigmoid(h3)


def _round_up(n, m):
    return ((n + m - 1) // m) * m


def _choose_tile(b_pad128, tb_max):
    """Lane-dense batch tile: multiple of the in-kernel chunk, >=2 grid steps when
    the batch allows (v7x megacore), capped by tb_max for VMEM headroom."""
    if b_pad128 <= 128:
        return 128
    half = _round_up(-(-b_pad128 // 2), 128)      # aim for 2 steps
    tb = min(tb_max, half)
    if tb >= _LANE_CHUNK:
        tb = _round_up(tb, _LANE_CHUNK)
    return min(tb, tb_max if tb_max >= _LANE_CHUNK else tb)


def mlp_forward(x, params, *, tb_max=16384):
    """x: (B, in_features) float32; params in torch layout. Returns (B, 1)."""
    w1, b1, w2, b2, w3, b3 = params          # (64,3),(64,),(32,64),(32,),(1,32),(1,)
    B, in_f = x.shape
    h1_dim = w1.shape[0]                      # 64
    h2_dim = w2.shape[0]                      # 32

    B_pad = _round_up(B, 128)                 # pad only to lane granularity
    TB = _choose_tile(B_pad, tb_max)
    grid = (pl.cdiv(B_pad, TB),)              # final block may be partial (clipped DMA)

    # Layout plumbing outside the kernel: batch -> lane axis, K padded 3 -> 8.
    xT = jnp.pad(x.astype(jnp.float32).T, ((0, _K_PAD - in_f), (0, B_pad - B)))
    w1p = jnp.pad(w1.astype(jnp.float32), ((0, 0), (0, _K_PAD - in_f)))    # (64, 8)
    b1c = b1.reshape(h1_dim, 1).astype(jnp.float32)
    b2c = b2.reshape(h2_dim, 1).astype(jnp.float32)
    w3c = w3.reshape(h2_dim, 1).astype(jnp.float32)                        # (32, 1)
    b3c = b3.reshape(1, 1).astype(jnp.float32)

    n_weight_elems = int(w1p.size + b1.size + w2.size + b2.size + w3.size + b3.size)
    cost = pl.CostEstimate(
        flops=int(2 * B_pad * (_K_PAD * h1_dim + h1_dim * h2_dim + h2_dim)),
        transcendentals=int(B_pad * (h1_dim + h2_dim + 1)),
        bytes_accessed=int(4 * (B_pad * (_K_PAD + 1) + n_weight_elems)),
    )

    out = pl.pallas_call(
        _mlp_kernel,
        out_shape=jax.ShapeDtypeStruct((1, B_pad), jnp.float32),
        grid=grid,
        in_specs=[
            pl.BlockSpec((_K_PAD, TB), lambda i: (0, i)),       # x tile (pipelined)
            pl.BlockSpec((h1_dim, _K_PAD), lambda i: (0, 0)),   # weights: VMEM-resident
            pl.BlockSpec((h1_dim, 1), lambda i: (0, 0)),
            pl.BlockSpec((h2_dim, h1_dim), lambda i: (0, 0)),
            pl.BlockSpec((h2_dim, 1), lambda i: (0, 0)),
            pl.BlockSpec((h2_dim, 1), lambda i: (0, 0)),
            pl.BlockSpec((1, 1), lambda i: (0, 0)),
        ],
        out_specs=pl.BlockSpec((1, TB), lambda i: (0, i)),      # lane-dense output
        compiler_params=pltpu.CompilerParams(
            dimension_semantics=("parallel",),                  # megacore-shardable
            vmem_limit_bytes=32 * 1024 * 1024,                  # explicit (v5e default 16MiB)
        ),
        cost_estimate=cost,
    )(xT, w1p, b1c, w2.astype(jnp.float32), b2c, w3c, b3c)

    # Back to torch convention: (B, 1), dropping batch padding.
    return out[0, :B].reshape(B, 1)


def init_params(key, input_size=3):
    # torch.nn.Linear default init: uniform(-1/sqrt(fan_in), 1/sqrt(fan_in)),
    # weight shape (out_features, in_features), bias shape (out_features,).
    sizes = [(input_size, 64), (64, 32), (32, 1)]
    params = []
    for i, (fan_in, fan_out) in enumerate(sizes):
        kw, kb = jax.random.split(jax.random.fold_in(key, i))
        bound = 1.0 / np.sqrt(fan_in)
        w = jax.random.uniform(kw, (fan_out, fan_in), jnp.float32, -bound, bound)
        b = jax.random.uniform(kb, (fan_out,), jnp.float32, -bound, bound)
        params.extend([w, b])
    return tuple(params)


def reference_forward(x, params):
    w1, b1, w2, b2, w3, b3 = params
    h = jax.nn.sigmoid(x @ w1.T + b1)
    h = jax.nn.sigmoid(h @ w2.T + b2)
    return jax.nn.sigmoid(h @ w3.T + b3)


if __name__ == "__main__":
    key = jax.random.PRNGKey(0)
    k_x, k_p = jax.random.split(key)

    batch, input_size = 8, 3
    x = jax.random.uniform(k_x, (batch, input_size), jnp.float32)
    params = init_params(k_p, input_size)

    out = mlp_forward(x, params)
    out = jax.block_until_ready(out)

    ref = reference_forward(x, params)
    # tanh-form sigmoid + MXU default precision vs XLA reference: allow a small margin.
    np.testing.assert_allclose(np.asarray(out), np.asarray(ref), rtol=5e-5, atol=5e-5)

    print("KERNEL_OK")
</pallas_src>

<mosaic_0001>
module attributes {stable_mosaic.version = 11 : i64} {
  func.func @_mlp_kernel(%arg0: i32, %arg1: memref<8x128xf32, #tpu.memory_space<vmem>>, %arg2: memref<64x8xf32, #tpu.memory_space<vmem>>, %arg3: memref<64x1xf32, #tpu.memory_space<vmem>>, %arg4: memref<32x64xf32, #tpu.memory_space<vmem>>, %arg5: memref<32x1xf32, #tpu.memory_space<vmem>>, %arg6: memref<32x1xf32, #tpu.memory_space<vmem>>, %arg7: memref<1x1xf32, #tpu.memory_space<vmem>>, %arg8: memref<1x128xf32, #tpu.memory_space<vmem>>) attributes {dimension_semantics = [#tpu.dimension_semantics<parallel>], iteration_bounds = array<i64: 1>, scalar_prefetch = 0 : i64, scratch_operands = 0 : i64, tpu.core_type = #tpu.core_type<tc>, window_params = [{transform_indices = @transform_0, window_bounds = array<i64: 8, 128>}, {pipeline_mode = #tpu.pipeline_mode<synchronous>, transform_indices = @transform_1, window_bounds = array<i64: 64, 8>}, {pipeline_mode = #tpu.pipeline_mode<synchronous>, transform_indices = @transform_2, window_bounds = array<i64: 64, 1>}, {pipeline_mode = #tpu.pipeline_mode<synchronous>, transform_indices = @transform_3, window_bounds = array<i64: 32, 64>}, {pipeline_mode = #tpu.pipeline_mode<synchronous>, transform_indices = @transform_4, window_bounds = array<i64: 32, 1>}, {pipeline_mode = #tpu.pipeline_mode<synchronous>, transform_indices = @transform_5, window_bounds = array<i64: 32, 1>}, {pipeline_mode = #tpu.pipeline_mode<synchronous>, transform_indices = @transform_6, window_bounds = array<i64: 1, 1>}, {transform_indices = @transform_7, window_bounds = array<i64: 1, 128>}]} {
    %c0 = arith.constant 0 : index
    %c0_0 = arith.constant 0 : index
    %0 = vector.load %arg2[%c0, %c0_0] : memref<64x8xf32, #tpu.memory_space<vmem>>, vector<64x8xf32>
    %c0_1 = arith.constant 0 : index
    %c0_2 = arith.constant 0 : index
    %1 = vector.load %arg3[%c0_1, %c0_2] : memref<64x1xf32, #tpu.memory_space<vmem>>, vector<64x1xf32>
    %c0_3 = arith.constant 0 : index
    %c0_4 = arith.constant 0 : index
    %2 = vector.load %arg4[%c0_3, %c0_4] : memref<32x64xf32, #tpu.memory_space<vmem>>, vector<32x64xf32>
    %c0_5 = arith.constant 0 : index
    %c0_6 = arith.constant 0 : index
    %3 = vector.load %arg5[%c0_5, %c0_6] : memref<32x1xf32, #tpu.memory_space<vmem>>, vector<32x1xf32>
    %c0_7 = arith.constant 0 : index
    %c0_8 = arith.constant 0 : index
    %4 = vector.load %arg6[%c0_7, %c0_8] : memref<32x1xf32, #tpu.memory_space<vmem>>, vector<32x1xf32>
    %c0_9 = arith.constant 0 : index
    %c0_10 = arith.constant 0 : index
    %5 = vector.load %arg7[%c0_9, %c0_10] : memref<1x1xf32, #tpu.memory_space<vmem>>, vector<1x1xf32>
    %c0_i32 = arith.constant 0 : i32
    %c1_i32 = arith.constant 1 : i32
    %6 = arith.muli %c0_i32, %c1_i32 : i32
    %c0_i32_11 = arith.constant 0 : i32
    %7 = arith.addi %c0_i32_11, %6 : i32
    %c128_i32 = arith.constant 128 : i32
    %8 = arith.muli %7, %c128_i32 : i32
    %9 = tpu.assume_multiple %8, 128 : i32
    %c0_12 = arith.constant 0 : index
    %10 = arith.index_cast %9 : i32 to index
    %11 = vector.load %arg1[%c0_12, %10] : memref<8x128xf32, #tpu.memory_space<vmem>>, vector<8x128xf32>
    %cst = arith.constant dense<0.000000e+00> : vector<64x128xf32>
    %12 = tpu.matmul %0, %11, %cst {dimension_numbers = #tpu.dot_dimension_numbers<[1], [0], [0], [1], [0, 0, 1, 1], [], []>} : vector<64x8xf32>, vector<8x128xf32>, vector<64x128xf32> -> vector<64x128xf32>
    %13 = vector.broadcast %1 : vector<64x1xf32> to vector<64x128xf32>
    %14 = arith.addf %12, %13 : vector<64x128xf32>
    %cst_13 = arith.constant 5.000000e-01 : f32
    %15 = vector.broadcast %cst_13 : f32 to vector<64x128xf32>
    %16 = arith.mulf %15, %14 : vector<64x128xf32>
    %17 = math.tanh %16 : vector<64x128xf32>
    %cst_14 = arith.constant 5.000000e-01 : f32
    %18 = vector.broadcast %cst_14 : f32 to vector<64x128xf32>
    %19 = arith.mulf %18, %17 : vector<64x128xf32>
    %cst_15 = arith.constant 5.000000e-01 : f32
    %20 = vector.broadcast %cst_15 : f32 to vector<64x128xf32>
    %21 = arith.addf %19, %20 : vector<64x128xf32>
    %cst_16 = arith.constant dense<0.000000e+00> : vector<32x128xf32>
    %22 = tpu.matmul %2, %21, %cst_16 {dimension_numbers = #tpu.dot_dimension_numbers<[1], [0], [0], [1], [0, 0, 1, 1], [], []>} : vector<32x64xf32>, vector<64x128xf32>, vector<32x128xf32> -> vector<32x128xf32>
    %23 = vector.broadcast %3 : vector<32x1xf32> to vector<32x128xf32>
    %24 = arith.addf %22, %23 : vector<32x128xf32>
    %cst_17 = arith.constant 5.000000e-01 : f32
    %25 = vector.broadcast %cst_17 : f32 to vector<32x128xf32>
    %26 = arith.mulf %25, %24 : vector<32x128xf32>
    %27 = math.tanh %26 : vector<32x128xf32>
    %cst_18 = arith.constant 5.000000e-01 : f32
    %28 = vector.broadcast %cst_18 : f32 to vector<32x128xf32>
    %29 = arith.mulf %28, %27 : vector<32x128xf32>
    %cst_19 = arith.constant 5.000000e-01 : f32
    %30 = vector.broadcast %cst_19 : f32 to vector<32x128xf32>
    %31 = arith.addf %29, %30 : vector<32x128xf32>
    %32 = vector.broadcast %4 : vector<32x1xf32> to vector<32x128xf32>
    %33 = arith.mulf %31, %32 : vector<32x128xf32>
    %cst_20 = arith.constant dense<0.000000e+00> : vector<128xf32>
    %34 = vector.multi_reduction <add>, %33, %cst_20 [0] : vector<32x128xf32> to vector<128xf32>
    %35 = vector.shape_cast %34 : vector<128xf32> to vector<1x128xf32>
    %36 = vector.broadcast %5 : vector<1x1xf32> to vector<1x128xf32>
    %37 = arith.addf %35, %36 : vector<1x128xf32>
    %cst_21 = arith.constant 5.000000e-01 : f32
    %38 = vector.broadcast %cst_21 : f32 to vector<1x128xf32>
    %39 = arith.mulf %38, %37 : vector<1x128xf32>
    %40 = math.tanh %39 : vector<1x128xf32>
    %cst_22 = arith.constant 5.000000e-01 : f32
    %41 = vector.broadcast %cst_22 : f32 to vector<1x128xf32>
    %42 = arith.mulf %41, %40 : vector<1x128xf32>
    %cst_23 = arith.constant 5.000000e-01 : f32
    %43 = vector.broadcast %cst_23 : f32 to vector<1x128xf32>
    %44 = arith.addf %42, %43 : vector<1x128xf32>
    %c0_24 = arith.constant 0 : index
    %45 = arith.index_cast %9 : i32 to index
    %46 = vector.load %arg8[%c0_24, %45] : memref<1x128xf32, #tpu.memory_space<vmem>>, vector<1x128xf32>
    tpu.vector_store %arg8[%c0_24, %45], %44 {strides = array<i32>} : memref<1x128xf32, #tpu.memory_space<vmem>>, vector<1x128xf32>,
    %c1_i32_25 = arith.constant 1 : i32
    return
  }
  func.func @transform_0(%arg0: i32) -> (i32, i32) {
    %c0_i32 = arith.constant 0 : i32
    %c0_i32_0 = arith.constant 0 : i32
    return %c0_i32, %arg0 : i32, i32
  }
  func.func @transform_1(%arg0: i32) -> (i32, i32) {
    %c0_i32 = arith.constant 0 : i32
    %c0_i32_0 = arith.constant 0 : i32
    %c0_i32_1 = arith.constant 0 : i32
    return %c0_i32, %c0_i32_0 : i32, i32
  }
  func.func @transform_2(%arg0: i32) -> (i32, i32) {
    %c0_i32 = arith.constant 0 : i32
    %c0_i32_0 = arith.constant 0 : i32
    %c0_i32_1 = arith.constant 0 : i32
    return %c0_i32, %c0_i32_0 : i32, i32
  }
  func.func @transform_3(%arg0: i32) -> (i32, i32) {
    %c0_i32 = arith.constant 0 : i32
    %c0_i32_0 = arith.constant 0 : i32
    %c0_i32_1 = arith.constant 0 : i32
    return %c0_i32, %c0_i32_0 : i32, i32
  }
  func.func @transform_4(%arg0: i32) -> (i32, i32) {
    %c0_i32 = arith.constant 0 : i32
    %c0_i32_0 = arith.constant 0 : i32
    %c0_i32_1 = arith.constant 0 : i32
    return %c0_i32, %c0_i32_0 : i32, i32
  }
  func.func @transform_5(%arg0: i32) -> (i32, i32) {
    %c0_i32 = arith.constant 0 : i32
    %c0_i32_0 = arith.constant 0 : i32
    %c0_i32_1 = arith.constant 0 : i32
    return %c0_i32, %c0_i32_0 : i32, i32
  }
  func.func @transform_6(%arg0: i32) -> (i32, i32) {
    %c0_i32 = arith.constant 0 : i32
    %c0_i32_0 = arith.constant 0 : i32
    %c0_i32_1 = arith.constant 0 : i32
    return %c0_i32, %c0_i32_0 : i32, i32
  }
  func.func @transform_7(%arg0: i32) -> (i32, i32) {
    %c0_i32 = arith.constant 0 : i32
    %c0_i32_0 = arith.constant 0 : i32
    return %c0_i32, %arg0 : i32, i32
  }
}

</mosaic_0001>

<llo_original>
// kernel: tpu_custom_call.1
$region0: #{tpu_custom_call.1}
  #allocation0 [shape = 'u32[]', space=smem, size = 0x4, offset = 0x4, fixed_abs, tag = 'smem constant byte address 0x4 - core index']
  #allocation1 [shape = 'u32[144,128]{1,0:T(1,128)}', space=vmem, size = 0x12000, scoped, tag = 'internal scratch']
  #allocation2 [shape = 'f32[1,1]{1,0:T(1,128)S(1)}', space=vmem, size = 0x200, scoped, tag = 'scoped memory for tpu_custom_call.1']
  %s0 = inlined_call_operand.vmem [shape: f32[8,128], index: 0, kind: input, shape index: {}]
  %s1 = inlined_call_operand.vmem [shape: f32[64,8], index: 1, kind: input, shape index: {}]
  %s2 = inlined_call_operand.vmem [shape: f32[64,1], index: 2, kind: input, shape index: {}]
  %s3 = inlined_call_operand.vmem [shape: f32[32,64], index: 3, kind: input, shape index: {}]
  %s4 = inlined_call_operand.vmem [shape: f32[32,1], index: 4, kind: input, shape index: {}]
  %s5 = inlined_call_operand.vmem [shape: f32[32,1], index: 5, kind: input, shape index: {}]
  %s6 = inlined_call_operand.<no memory space> [shape: f32[1,1], index: 6, kind: input, shape index: {}]
  %s7 = inlined_call_operand.hbm [shape: f32[1,128], index: 7, kind: output, shape index: {}]
  %s8 = sld [smem:[#allocation0]]
  $region38: #{tpu_custom_call.1} parent=0
    _
  %s10 = ssub.s32 1, %s8
  %s11 = scalar_select 0, %s10, %s8
  %v12 = vstv %s6
  %13 = vst [vmem:[#allocation2] sm:$0x1] %v12
  $region1: #{tpu_custom_call.1} parent=0
    #allocation3 [shape = 'u8[512]{0}', space=vmem, size = 0x400, scoped, tag = 'output window, operand 0, single buffered']
    #allocation4 [shape = 's32[1]{0}', space=sflag, size = 0x4, scoped, tag = 'scoped memory for tpu_custom_call.1']
    %14 = vsyncpa [#allocation4], 0
    // Predicated region
    $region2: #{tpu_custom_call.1} parent=1 // pred_check
      _
    $region3: #{tpu_custom_call.1} parent=1 // pred_check_branch
      %16 = sbr.rel (0) target = $region5
    $region4: #{tpu_custom_call.1} parent=1 // pred_region
      _
    $region5: #{tpu_custom_call.1} parent=1 // pred_fallthru
      _
    // Predicated region
    $region6: #{tpu_custom_call.1} parent=1 // pred_check
      _
    $region7: #{tpu_custom_call.1} parent=1 // pred_check_branch
      %18 = sbr.rel (0) target = $region9
    $region8: #{tpu_custom_call.1} parent=1 // pred_region
      _
    $region9: #{tpu_custom_call.1} parent=1 // pred_fallthru
      _
    // Predicated region
    $region10: #{tpu_custom_call.1} parent=1 // pred_check
      _
    $region11: #{tpu_custom_call.1} parent=1 // pred_check_branch
      %20 = sbr.rel (0) target = $region13
    $region12: #{tpu_custom_call.1} parent=1 // pred_region
      _
    $region13: #{tpu_custom_call.1} parent=1 // pred_fallthru
      _
    // Predicated region
    $region14: #{tpu_custom_call.1} parent=1 // pred_check
      _
    $region15: #{tpu_custom_call.1} parent=1 // pred_check_branch
      %22 = sbr.rel (0) target = $region17
    $region16: #{tpu_custom_call.1} parent=1 // pred_region
      _
    $region17: #{tpu_custom_call.1} parent=1 // pred_fallthru
      _
    // Predicated region
    $region18: #{tpu_custom_call.1} parent=1 // pred_check
      _
    $region19: #{tpu_custom_call.1} parent=1 // pred_check_branch
      %24 = sbr.rel (0) target = $region21
    $region20: #{tpu_custom_call.1} parent=1 // pred_region
      _
    $region21: #{tpu_custom_call.1} parent=1 // pred_fallthru
      _
    // Predicated region
    $region22: #{tpu_custom_call.1} parent=1 // pred_check
      _
    $region23: #{tpu_custom_call.1} parent=1 // pred_check_branch
      %26 = sbr.rel (0) target = $region25
    $region24: #{tpu_custom_call.1} parent=1 // pred_region
      _
    $region25: #{tpu_custom_call.1} parent=1 // pred_fallthru
      _
    // Predicated region
    $region26: #{tpu_custom_call.1} parent=1 // pred_check
      _
    $region27: #{tpu_custom_call.1} parent=1 // pred_check_branch
      %28 = sbr.rel (0) target = $region29
    $region28: #{tpu_custom_call.1} parent=1 // pred_region
      _
    $region29: #{tpu_custom_call.1} parent=1 // pred_fallthru
      _
    %v29 = vld [vmem:[%s1] sm:$0xff]
    %v30 = vld [vmem:[%s1 + $0x8] sm:$0xff]
    %v31 = vld [vmem:[%s1 + $0x10] sm:$0xff]
    %v32 = vld [vmem:[%s1 + $0x18] sm:$0xff]
    %v33 = vld [vmem:[%s1 + $0x20] sm:$0xff]
    %v34 = vld [vmem:[%s1 + $0x28] sm:$0xff]
    %v35 = vld [vmem:[%s1 + $0x30] sm:$0xff]
    %v36 = vld [vmem:[%s1 + $0x38] sm:$0xff]
    %v37 = vld [vmem:[%s2] sm:$0xff]
    %v38 = vld [vmem:[%s2 + $0x8] sm:$0xff]
    %v39 = vld [vmem:[%s2 + $0x10] sm:$0xff]
    %v40 = vld [vmem:[%s2 + $0x18] sm:$0xff]
    %v41 = vld [vmem:[%s2 + $0x20] sm:$0xff]
    %v42 = vld [vmem:[%s2 + $0x28] sm:$0xff]
    %v43 = vld [vmem:[%s2 + $0x30] sm:$0xff]
    %v44 = vld [vmem:[%s2 + $0x38] sm:$0xff]
    %v45 = vld [vmem:[%s3] sm:$0xff]
    %v46 = vld [vmem:[%s3 + $0x8] sm:$0xff]
    %v47 = vld [vmem:[%s3 + $0x10] sm:$0xff]
    %v48 = vld [vmem:[%s3 + $0x18] sm:$0xff]
    %v49 = vld [vmem:[%s4] sm:$0xff]
    %v50 = vld [vmem:[%s4 + $0x8] sm:$0xff]
    %v51 = vld [vmem:[%s4 + $0x10] sm:$0xff]
    %v52 = vld [vmem:[%s4 + $0x18] sm:$0xff]
    %v53 = vld [vmem:[%s5] sm:$0xff]
    %v54 = vld [vmem:[%s5 + $0x8] sm:$0xff]
    %v55 = vld [vmem:[%s5 + $0x10] sm:$0xff]
    %v56 = vld [vmem:[%s5 + $0x18] sm:$0xff]
    %v57 = vld [vmem:[#allocation2] sm:$0x1]
    %v58 = vld [vmem:[%s0] sm:$0xff]
    %60 = vset.pattern.permute.xlu0 0
    %61 = vperm.xlu0 %60, %v37
    %v62 = vpop.permute.xlu0 %61
    %65 = vset.pattern.permute.xlu0 0
    %66 = vperm.xlu0 %65, %v38
    %v67 = vpop.permute.xlu0 %66
    %70 = vset.pattern.permute.xlu0 0
    %71 = vperm.xlu0 %70, %v39
    %v72 = vpop.permute.xlu0 %71
    %75 = vset.pattern.permute.xlu0 0
    %76 = vperm.xlu0 %75, %v40
    %v77 = vpop.permute.xlu0 %76
    %80 = vset.pattern.permute.xlu0 0
    %81 = vperm.xlu0 %80, %v41
    %v82 = vpop.permute.xlu0 %81
    %85 = vset.pattern.permute.xlu0 0
    %86 = vperm.xlu0 %85, %v42
    %v87 = vpop.permute.xlu0 %86
    %90 = vset.pattern.permute.xlu0 0
    %91 = vperm.xlu0 %90, %v43
    %v92 = vpop.permute.xlu0 %91
    %95 = vset.pattern.permute.xlu0 0
    %96 = vperm.xlu0 %95, %v44
    %v97 = vpop.permute.xlu0 %96
    %vm99 = vcmask 64512
    %v101 = vsel %vm99, %v29, 0
    %v104 = vsel %vm99, %v30, 0
    %v107 = vsel %vm99, %v31, 0
    %v110 = vsel %vm99, %v32, 0
    %v113 = vsel %vm99, %v33, 0
    %v116 = vsel %vm99, %v34, 0
    %v119 = vsel %vm99, %v35, 0
    %v122 = vsel %vm99, %v36, 0
    %124 = vmatprep.subr.mxu0 0.0
    %125 = vmatpush1.msra.mxu0 %v58
    %126 = vmatprep.subr.mxu0 0.0
    %127 = vmatpush1.msra.mxu0 0.0
    %128 = vmatprep.subr.mxu0 0.0
    %129 = vmatpush1.msra.mxu0 0.0
    %130 = vmatprep.subr.mxu0 0.0
    %131 = vmatpush1.msra.mxu0 0.0
    %132 = vmatprep.subr.mxu0 0.0
    %133 = vmatpush1.msra.mxu0 0.0
    %134 = vmatprep.subr.mxu0 0.0
    %135 = vmatpush1.msra.mxu0 0.0
    %136 = vmatprep.subr.mxu0 0.0
    %137 = vmatpush1.msra.mxu0 0.0
    %138 = vmatprep.subr.mxu0 0.0
    %139 = vmatpush1.msra.mxu0 0.0
    %140 = vmatprep.subr.mxu0 0.0
    %141 = vmatpush1.msra.mxu0 0.0
    %142 = vmatprep.subr.mxu0 0.0
    %143 = vmatpush1.msra.mxu0 0.0
    %144 = vmatprep.subr.mxu0 0.0
    %145 = vmatpush1.msra.mxu0 0.0
    %146 = vmatprep.subr.mxu0 0.0
    %147 = vmatpush1.msra.mxu0 0.0
    %148 = vmatprep.subr.mxu0 0.0
    %149 = vmatpush1.msra.mxu0 0.0
    %150 = vmatprep.subr.mxu0 0.0
    %151 = vmatpush1.msra.mxu0 0.0
    %152 = vmatprep.subr.mxu0 0.0
    %153 = vmatpush1.msra.mxu0 0.0
    %154 = vmatprep.subr.mxu0 0.0
    %155 = vmatpush1.msra.mxu0 0.0
    %156 = vmatprep.subr.mxu0 0.0
    %157 = vmatpush1.msra.mxu0 0.0
    %158 = vmatprep.subr.mxu0 0.0
    %159 = vmatpush1.msra.mxu0 0.0
    %160 = vmatprep.subr.mxu0 0.0
    %161 = vmatpush1.msra.mxu0 0.0
    %162 = vmatprep.subr.mxu0 0.0
    %163 = vmatpush1.msra.mxu0 0.0
    %164 = vmatprep.subr.mxu0 0.0
    %165 = vmatpush1.msra.mxu0 0.0
    %166 = vmatprep.subr.mxu0 0.0
    %167 = vmatpush1.msra.mxu0 0.0
    %168 = vmatprep.subr.mxu0 0.0
    %169 = vmatpush1.msra.mxu0 0.0
    %170 = vmatprep.subr.mxu0 0.0
    %171 = vmatpush1.msra.mxu0 0.0
    %172 = vmatprep.subr.mxu0 0.0
    %173 = vmatpush1.msra.mxu0 0.0
    %174 = vmatprep.subr.mxu0 0.0
    %175 = vmatpush1.msra.mxu0 0.0
    %176 = vmatprep.subr.mxu0 0.0
    %177 = vmatpush1.msra.mxu0 0.0
    %178 = vmatprep.subr.mxu0 0.0
    %179 = vmatpush1.msra.mxu0 0.0
    %180 = vmatprep.subr.mxu0 0.0
    %181 = vmatpush1.msra.mxu0 0.0
    %182 = vmatprep.subr.mxu0 0.0
    %183 = vmatpush1.msra.mxu0 0.0
    %184 = vmatprep.subr.mxu0 0.0
    %185 = vmatpush1.msra.mxu0 0.0
    %186 = vmatprep.subr.mxu0 0.0
    %187 = vmatpush1.msra.mxu0 0.0
    %188 = vmatprep.mubr.f32.mxu0 0.0
    %189 = vmatmul.mubr.f32.gmra.mrb[0].mxu0 %v101
    %v190 = vpop.f32.mrb[0].mxu0
    %v191 = vadd.f32 %v62, %v190
    %v192 = vpop.f32.mrb[0].mxu0
    %193 = vmatprep.mubr.f32.mxu0 0.0
    %194 = vmatmul.mubr.f32.gmra.mrb[0].mxu0 %v104
    %v195 = vpop.f32.mrb[0].mxu0
    %v196 = vadd.f32 %v67, %v195
    %v197 = vpop.f32.mrb[0].mxu0
    %198 = vmatprep.mubr.f32.mxu0 0.0
    %199 = vmatmul.mubr.f32.gmra.mrb[0].mxu0 %v107
    %v200 = vpop.f32.mrb[0].mxu0
    %v201 = vadd.f32 %v72, %v200
    %v202 = vpop.f32.mrb[0].mxu0
    %203 = vmatprep.mubr.f32.mxu0 0.0
    %204 = vmatmul.mubr.f32.gmra.mrb[0].mxu0 %v110
    %v205 = vpop.f32.mrb[0].mxu0
    %v206 = vadd.f32 %v77, %v205
    %v207 = vpop.f32.mrb[0].mxu0
    %208 = vmatprep.mubr.f32.mxu0 0.0
    %209 = vmatmul.mubr.f32.gmra.mrb[0].mxu0 %v113
    %v210 = vpop.f32.mrb[0].mxu0
    %v211 = vadd.f32 %v82, %v210
    %v212 = vpop.f32.mrb[0].mxu0
    %213 = vmatprep.mubr.f32.mxu0 0.0
    %214 = vmatmul.mubr.f32.gmra.mrb[0].mxu0 %v116
    %v215 = vpop.f32.mrb[0].mxu0
    %v216 = vadd.f32 %v87, %v215
    %v217 = vpop.f32.mrb[0].mxu0
    %218 = vmatprep.mubr.f32.mxu0 0.0
    %219 = vmatmul.mubr.f32.gmra.mrb[0].mxu0 %v119
    %v220 = vpop.f32.mrb[0].mxu0
    %v221 = vadd.f32 %v92, %v220
    %v222 = vpop.f32.mrb[0].mxu0
    %223 = vmatprep.mubr.f32.mxu0 0.0
    %224 = vmatmul.mubr.f32.gmra.mrb[0].mxu0 %v122
    %v225 = vpop.f32.mrb[0].mxu0
    %v226 = vadd.f32 %v97, %v225
    %v227 = vpop.f32.mrb[0].mxu0
    %228 = vdwg.mxu0
    %v229 = vmul.f32 %v191, 0.5
    %v230 = vmul.f32 %v196, 0.5
    %v231 = vmul.f32 %v201, 0.5
    %v232 = vmul.f32 %v206, 0.5
    %v233 = vmul.f32 %v211, 0.5
    %v234 = vmul.f32 %v216, 0.5
    %v235 = vmul.f32 %v221, 0.5
    %v236 = vmul.f32 %v226, 0.5
    %v237 = vtanh.pop %v229
    %v238 = vtanh.pop %v230
    %v239 = vtanh.pop %v231
    %v240 = vtanh.pop %v232
    %v241 = vtanh.pop %v233
    %v242 = vtanh.pop %v234
    %v243 = vtanh.pop %v235
    %v244 = vtanh.pop %v236
    %v245 = vmul.f32 %v237, 0.5
    %v246 = vmul.f32 %v238, 0.5
    %v247 = vmul.f32 %v239, 0.5
    %v248 = vmul.f32 %v240, 0.5
    %v249 = vmul.f32 %v241, 0.5
    %v250 = vmul.f32 %v242, 0.5
    %v251 = vmul.f32 %v243, 0.5
    %v252 = vmul.f32 %v244, 0.5
    %v253 = vadd.f32 %v245, 0.5
    %v254 = vadd.f32 %v246, 0.5
    %v255 = vadd.f32 %v247, 0.5
    %v256 = vadd.f32 %v248, 0.5
    %v257 = vadd.f32 %v249, 0.5
    %v258 = vadd.f32 %v250, 0.5
    %v259 = vadd.f32 %v251, 0.5
    %v260 = vadd.f32 %v252, 0.5
    %262 = vset.pattern.permute.xlu0 0
    %263 = vperm.xlu0 %262, %v49
    %v264 = vpop.permute.xlu0 %263
    %267 = vset.pattern.permute.xlu0 0
    %268 = vperm.xlu0 %267, %v50
    %v269 = vpop.permute.xlu0 %268
    %272 = vset.pattern.permute.xlu0 0
    %273 = vperm.xlu0 %272, %v51
    %v274 = vpop.permute.xlu0 %273
    %277 = vset.pattern.permute.xlu0 0
    %278 = vperm.xlu0 %277, %v52
    %v279 = vpop.permute.xlu0 %278
    %vm281 = vcmask 523264
    %v283 = vsel %vm281, %v45, 0
    %v286 = vsel %vm281, %v46, 0
    %v289 = vsel %vm281, %v47, 0
    %v292 = vsel %vm281, %v48, 0
    %294 = vmatprep.subr.mxu0 0.0
    %295 = vmatpush1.msra.mxu0 %v253
    %296 = vmatprep.subr.mxu0 0.0
    %297 = vmatpush1.msra.mxu0 %v254
    %298 = vmatprep.subr.mxu0 0.0
    %299 = vmatpush1.msra.mxu0 %v255
    %300 = vmatprep.subr.mxu0 0.0
    %301 = vmatpush1.msra.mxu0 %v256
    %302 = vmatprep.subr.mxu0 0.0
    %303 = vmatpush1.msra.mxu0 %v257
    %304 = vmatprep.subr.mxu0 0.0
    %305 = vmatpush1.msra.mxu0 %v258
    %306 = vmatprep.subr.mxu0 0.0
    %307 = vmatpush1.msra.mxu0 %v259
    %308 = vmatprep.subr.mxu0 0.0
    %309 = vmatpush1.msra.mxu0 %v260
    %310 = vmatprep.subr.mxu0 0.0
    %311 = vmatpush1.msra.mxu0 0.0
    %312 = vmatprep.subr.mxu0 0.0
    %313 = vmatpush1.msra.mxu0 0.0
    %314 = vmatprep.subr.mxu0 0.0
    %315 = vmatpush1.msra.mxu0 0.0
    %316 = vmatprep.subr.mxu0 0.0
    %317 = vmatpush1.msra.mxu0 0.0
    %318 = vmatprep.subr.mxu0 0.0
    %319 = vmatpush1.msra.mxu0 0.0
    %320 = vmatprep.subr.mxu0 0.0
    %321 = vmatpush1.msra.mxu0 0.0
    %322 = vmatprep.subr.mxu0 0.0
    %323 = vmatpush1.msra.mxu0 0.0
    %324 = vmatprep.subr.mxu0 0.0
    %325 = vmatpush1.msra.mxu0 0.0
    %326 = vmatprep.subr.mxu0 0.0
    %327 = vmatpush1.msra.mxu0 0.0
    %328 = vmatprep.subr.mxu0 0.0
    %329 = vmatpush1.msra.mxu0 0.0
    %330 = vmatprep.subr.mxu0 0.0
    %331 = vmatpush1.msra.mxu0 0.0
    %332 = vmatprep.subr.mxu0 0.0
    %333 = vmatpush1.msra.mxu0 0.0
    %334 = vmatprep.subr.mxu0 0.0
    %335 = vmatpush1.msra.mxu0 0.0
    %336 = vmatprep.subr.mxu0 0.0
    %337 = vmatpush1.msra.mxu0 0.0
    %338 = vmatprep.subr.mxu0 0.0
    %339 = vmatpush1.msra.mxu0 0.0
    %340 = vmatprep.subr.mxu0 0.0
    %341 = vmatpush1.msra.mxu0 0.0
    %342 = vmatprep.subr.mxu0 0.0
    %343 = vmatpush1.msra.mxu0 0.0
    %344 = vmatprep.subr.mxu0 0.0
    %345 = vmatpush1.msra.mxu0 0.0
    %346 = vmatprep.subr.mxu0 0.0
    %347 = vmatpush1.msra.mxu0 0.0
    %348 = vmatprep.subr.mxu0 0.0
    %349 = vmatpush1.msra.mxu0 0.0
    %350 = vmatprep.subr.mxu0 0.0
    %351 = vmatpush1.msra.mxu0 0.0
    %352 = vmatprep.subr.mxu0 0.0
    %353 = vmatpush1.msra.mxu0 0.0
    %354 = vmatprep.subr.mxu0 0.0
    %355 = vmatpush1.msra.mxu0 0.0
    %356 = vmatprep.subr.mxu0 0.0
    %357 = vmatpush1.msra.mxu0 0.0
    %358 = vmatprep.mubr.f32.mxu0 0.0
    %359 = vmatmul.mubr.f32.gmra.mrb[0].mxu0 %v283
    %v360 = vpop.f32.mrb[0].mxu0
    %v361 = vadd.f32 %v264, %v360
    %v362 = vpop.f32.mrb[0].mxu0
    %363 = vmatprep.mubr.f32.mxu0 0.0
    %364 = vmatmul.mubr.f32.gmra.mrb[0].mxu0 %v286
    %v365 = vpop.f32.mrb[0].mxu0
    %v366 = vadd.f32 %v269, %v365
    %v367 = vpop.f32.mrb[0].mxu0
    %368 = vmatprep.mubr.f32.mxu0 0.0
    %369 = vmatmul.mubr.f32.gmra.mrb[0].mxu0 %v289
    %v370 = vpop.f32.mrb[0].mxu0
    %v371 = vadd.f32 %v274, %v370
    %v372 = vpop.f32.mrb[0].mxu0
    %373 = vmatprep.mubr.f32.mxu0 0.0
    %374 = vmatmul.mubr.f32.gmra.mrb[0].mxu0 %v292
    %v375 = vpop.f32.mrb[0].mxu0
    %v376 = vadd.f32 %v279, %v375
    %v377 = vpop.f32.mrb[0].mxu0
    %378 = vdwg.mxu0
    %v379 = vmul.f32 %v361, 0.5
    %v380 = vmul.f32 %v366, 0.5
    %v381 = vmul.f32 %v371, 0.5
    %v382 = vmul.f32 %v376, 0.5
    %v383 = vtanh.pop %v379
    %v384 = vtanh.pop %v380
    %v385 = vtanh.pop %v381
    %v386 = vtanh.pop %v382
    %v387 = vmul.f32 %v383, 0.5
    %v388 = vmul.f32 %v384, 0.5
    %v389 = vmul.f32 %v385, 0.5
    %v390 = vmul.f32 %v386, 0.5
    %v391 = vadd.f32 %v387, 0.5
    %v392 = vadd.f32 %v388, 0.5
    %v393 = vadd.f32 %v389, 0.5
    %v394 = vadd.f32 %v390, 0.5
    %396 = vset.pattern.permute.xlu0 0
    %397 = vperm.xlu0 %396, %v53
    %v398 = vpop.permute.xlu0 %397
    %401 = vset.pattern.permute.xlu0 0
    %402 = vperm.xlu0 %401, %v54
    %v403 = vpop.permute.xlu0 %402
    %406 = vset.pattern.permute.xlu0 0
    %407 = vperm.xlu0 %406, %v55
    %v408 = vpop.permute.xlu0 %407
    %411 = vset.pattern.permute.xlu0 0
    %412 = vperm.xlu0 %411, %v56
    %v413 = vpop.permute.xlu0 %412
    %v415 = vmul.f32 %v391, %v398
    %v416 = vmul.f32 %v392, %v403
    %v417 = vmul.f32 %v393, %v408
    %v418 = vmul.f32 %v394, %v413
    %v419 = vadd.f32 %v415, %v416
    %v420 = vadd.f32 %v419, %v417
    %v421 = vadd.f32 %v420, %v418
    %v422 = vrot.slane %v421, 4
    %v423 = vadd.f32 %v421, %v422
    %v424 = vrot.slane %v423, 2
    %v425 = vadd.f32 %v423, %v424
    %v426 = vrot.slane %v425, 1
    %v427 = vadd.f32 %v425, %v426
    %429 = vset.pattern.permute.xlu0 0
    %430 = vperm.xlu0 %429, %v57
    %v431 = vpop.permute.xlu0 %430
    %v433 = vlaneseq
    %v434 = vshrl.u32 %v433, 7
    %v435 = vsub.s32 0, %v434
    %v436 = vrot.slane %v431, %v435
    %v437 = vadd.f32 %v427, %v436
    %v438 = vmul.f32 %v437, 0.5
    %v439 = vtanh.pop %v438
    %v440 = vmul.f32 %v439, 0.5
    %v441 = vadd.f32 %v440, 0.5
    %442 = vst [vmem:[#allocation3] sm:$0x1] %v441
    // Predicated region
    $region30: #{tpu_custom_call.1} parent=1 // pred_check
      _
    $region31: #{tpu_custom_call.1} parent=1 // pred_check_branch
      %444 = sbr.rel (0) target = $region33
    $region32: #{tpu_custom_call.1} parent=1 // pred_region
      %s446 = ssub.s32 16, 16
      %447 = vsyncadd [#allocation4], %s446
      %s449 = sshll.u32 [#allocation3], 4
      %s450 = int_to_ptr.vmem [resolvable:$true] %s449
      %452 = dma.vmem_to_hbm [thread:$0]  %s450, 16, %s7, [#allocation4]
    $region33: #{tpu_custom_call.1} parent=1 // pred_fallthru
      _
    // Predicated region
    $region34: #{tpu_custom_call.1} parent=1 // pred_check
      _
    $region35: #{tpu_custom_call.1} parent=1 // pred_check_branch
      %454 = sbr.rel (0) target = $region37
    $region36: #{tpu_custom_call.1} parent=1 // pred_region
      %455 = dma.done [#allocation4], 16
    $region37: #{tpu_custom_call.1} parent=1 // pred_fallthru
      _
    %456 = vsyncpa [#allocation4], 1

</llo_original>
